<compile_context>
chip_gen: v6e
topology: v6e:2x2x1
jax: 0.10.0
libtpu: 0.0.40
codegen_flags: <defaults>
</compile_context>

<pallas_src>
import functools

import jax
import jax.numpy as jnp
from jax.experimental import pallas as pl
from jax.experimental.pallas import tpu as pltpu


# ----------------------------------------------------------------------------
# Fused kernel: per-class stats -> class noise -> blend, one (B, tD) tile of x.
# ----------------------------------------------------------------------------
def _noise_layer_kernel(alpha, x_ref, eps_ref, mask_cb_ref, onehot_y_ref,
                        onehot_newy_ref, inv_n_ref, inv_nm1_ref, out_ref):
    x = x_ref[...].astype(jnp.float32)                                  # (B, tD)
    mask_cb = mask_cb_ref[...]                                          # (C, B) one-hot membership

    # per-class mean over the batch
    s1 = jnp.dot(mask_cb, x, preferred_element_type=jnp.float32)        # (C, tD)
    mean = s1 * inv_n_ref[...]                                          # (C, tD); empty class -> NaN

    # two-pass unbiased variance: center each row with its own class mean
    mean_rows = jnp.dot(onehot_y_ref[...], mean,
                        preferred_element_type=jnp.float32)             # (B, tD) == mean[y]
    d = x - mean_rows
    s2 = jnp.dot(mask_cb, d * d, preferred_element_type=jnp.float32)    # (C, tD)
    var = s2 * inv_nm1_ref[...]                                         # singleton class -> NaN
    std = jnp.sqrt(jnp.maximum(var, 0.0))

    # class_noise = torch.normal(mean, std) == mean + std * eps
    noise = mean + std * eps_ref[...]                                   # (C, tD)

    # gather class_noise[newY] as a one-hot matmul (MXU, no data-dependent DMA)
    gathered = jnp.dot(onehot_newy_ref[...], noise,
                       preferred_element_type=jnp.float32)              # (B, tD)

    out_ref[...] = ((1.0 - alpha) * x + alpha * gathered).astype(out_ref.dtype)


# ----------------------------------------------------------------------------
# Tile-size heuristic: biggest lane-dense tile fitting a conservative budget.
# ----------------------------------------------------------------------------
def _pick_tile_d(B, C, D, x_itemsize, out_itemsize, budget_bytes=16 * 1024 * 1024):
    per_col = 2 * (B * x_itemsize + B * out_itemsize + C * 4)   # double-buffered streams
    per_col += 4 * B * 4 + 3 * C * 4                            # in-kernel f32 temporaries
    td = int(budget_bytes // max(per_col, 1))
    if td >= D:
        return D                                                 # single full-width block
    return max(128, (td // 128) * 128)                           # keep (., 128) alignment


# ----------------------------------------------------------------------------
# Wrapper: precompute tiny grid-invariant class tables in XLA, launch the kernel.
# ----------------------------------------------------------------------------
def noise_layer_blend(x2d, eps, y, new_y, alpha, num_classes, tile_d=None):
    B, D = x2d.shape
    C = int(num_classes)

    y32 = y.astype(jnp.int32)
    newy32 = new_y.astype(jnp.int32)
    class_ids = jnp.arange(C, dtype=jnp.int32)

    mask_cb = (y32[None, :] == class_ids[:, None]).astype(jnp.float32)         # (C, B)
    onehot_y = jnp.transpose(mask_cb)                                           # (B, C)
    onehot_newy = (newy32[:, None] == class_ids[None, :]).astype(jnp.float32)   # (B, C)
    counts = jnp.sum(mask_cb, axis=1, keepdims=True)                            # (C, 1)
    inv_n = 1.0 / counts                  # inf for empty classes  -> NaN mean (torch-like)
    inv_nm1 = 1.0 / (counts - 1.0)        # inf for singletons     -> NaN std  (torch-like)

    if tile_d is None:
        tile_d = _pick_tile_d(B, C, D, x2d.dtype.itemsize, x2d.dtype.itemsize)
    tile_d = int(min(tile_d, D))
    grid = (pl.cdiv(D, tile_d),)

    kernel = functools.partial(_noise_layer_kernel, float(alpha))
    return pl.pallas_call(
        kernel,
        out_shape=jax.ShapeDtypeStruct((B, D), x2d.dtype),      # preserves input dtype
        grid=grid,
        in_specs=[
            pl.BlockSpec((B, tile_d), lambda j: (0, j)),        # x        (streamed)
            pl.BlockSpec((C, tile_d), lambda j: (0, j)),        # eps      (streamed)
            pl.BlockSpec((C, B), lambda j: (0, 0)),             # one-hot membership
            pl.BlockSpec((B, C), lambda j: (0, 0)),             # one-hot of y
            pl.BlockSpec((B, C), lambda j: (0, 0)),             # one-hot of newY
            pl.BlockSpec((C, 1), lambda j: (0, 0)),             # 1/N
            pl.BlockSpec((C, 1), lambda j: (0, 0)),             # 1/(N-1)
        ],
        out_specs=pl.BlockSpec((B, tile_d), lambda j: (0, j)),
        compiler_params=pltpu.CompilerParams(
            dimension_semantics=("parallel",),                  # megacore on v7x
            vmem_limit_bytes=48 * 1024 * 1024),
    )(x2d, eps, mask_cb, onehot_y, onehot_newy, inv_n, inv_nm1)


# ----------------------------------------------------------------------------
# Full forward glue, matching NoiseLayer.forward(x, y) -> (mixed_x, newY).
# torch.normal / torch.randperm are reproduced host-side with jax.random.
# ----------------------------------------------------------------------------
def _sample_noise_and_perm(key, batch_size, num_classes, feat_dim):
    k_noise, k_perm = jax.random.split(key)
    eps = jax.random.normal(k_noise, (num_classes, feat_dim), jnp.float32)
    index = jax.random.permutation(k_perm, batch_size)
    return eps, index


def noise_layer_forward(x, y, alpha, num_classes, key, tile_d=None):
    orig_shape = x.shape
    B = x.shape[0]
    x2d = x.reshape(B, -1)                       # native dtype; no host-side upcast
    D = x2d.shape[1]
    eps, index = _sample_noise_and_perm(key, B, num_classes, D)
    new_y = y[index]                             # torch: y[randperm(B)]
    out2d = noise_layer_blend(x2d, eps, y, new_y, alpha, num_classes, tile_d)
    return out2d.reshape(orig_shape), new_y


if __name__ == "__main__":
    # small NCHW example: batch=8, channels=4, spatial=16x16, num_classes=4
    B, Cimg, H, W = 8, 4, 16, 16
    num_classes = 4
    alpha = 0.3

    key = jax.random.PRNGKey(0)
    kx, kfwd = jax.random.split(key)
    x = jax.random.normal(kx, (B, Cimg, H, W), dtype=jnp.float32)
    # deterministic labels: every class has >= 2 samples so the torch-style
    # unbiased std is finite (empty / singleton classes give NaN, as in PyTorch).
    y = jnp.arange(B, dtype=jnp.int32) % num_classes

    # tile_d=256 forces a 4-step grid on D=1024 to exercise the pipelined tiling.
    out, new_y = noise_layer_forward(x, y, alpha, num_classes, kfwd, tile_d=256)
    jax.block_until_ready(out)
    jax.block_until_ready(new_y)

    # --- correctness check vs. pure-JAX reference (same eps / permutation) ---
    x2d = x.reshape(B, -1).astype(jnp.float32)
    D = x2d.shape[1]
    eps, index = _sample_noise_and_perm(kfwd, B, num_classes, D)
    assert jnp.array_equal(new_y, y[index])

    ref_mean = jnp.stack([x2d[y == c].mean(0) for c in range(num_classes)])
    ref_std = jnp.stack([x2d[y == c].std(0, ddof=1) for c in range(num_classes)])
    ref_noise = ref_mean + ref_std * eps
    ref_out = ((1.0 - alpha) * x2d + alpha * ref_noise[new_y]).reshape(x.shape)

    assert out.shape == x.shape and out.dtype == x.dtype
    assert new_y.shape == y.shape
    assert jnp.allclose(out, ref_out, atol=1e-5, rtol=1e-5)

    print("KERNEL_OK")
</pallas_src>

<mosaic_0001>
module attributes {stable_mosaic.version = 11 : i64} {
  func.func @_noise_layer_kernel(%arg0: i32, %arg1: memref<8x256xf32, #tpu.memory_space<vmem>>, %arg2: memref<4x256xf32, #tpu.memory_space<vmem>>, %arg3: memref<4x8xf32, #tpu.memory_space<vmem>>, %arg4: memref<8x4xf32, #tpu.memory_space<vmem>>, %arg5: memref<8x4xf32, #tpu.memory_space<vmem>>, %arg6: memref<4x1xf32, #tpu.memory_space<vmem>>, %arg7: memref<4x1xf32, #tpu.memory_space<vmem>>, %arg8: memref<8x256xf32, #tpu.memory_space<vmem>>) attributes {dimension_semantics = [#tpu.dimension_semantics<parallel>], iteration_bounds = array<i64: 4>, scalar_prefetch = 0 : i64, scratch_operands = 0 : i64, tpu.core_type = #tpu.core_type<tc>, window_params = [{transform_indices = @transform_0, window_bounds = array<i64: 8, 256>}, {transform_indices = @transform_1, window_bounds = array<i64: 4, 256>}, {pipeline_mode = #tpu.pipeline_mode<synchronous>, transform_indices = @transform_2, window_bounds = array<i64: 4, 8>}, {pipeline_mode = #tpu.pipeline_mode<synchronous>, transform_indices = @transform_3, window_bounds = array<i64: 8, 4>}, {pipeline_mode = #tpu.pipeline_mode<synchronous>, transform_indices = @transform_4, window_bounds = array<i64: 8, 4>}, {pipeline_mode = #tpu.pipeline_mode<synchronous>, transform_indices = @transform_5, window_bounds = array<i64: 4, 1>}, {pipeline_mode = #tpu.pipeline_mode<synchronous>, transform_indices = @transform_6, window_bounds = array<i64: 4, 1>}, {transform_indices = @transform_7, window_bounds = array<i64: 8, 256>}]} {
    %c0 = arith.constant 0 : index
    %c0_0 = arith.constant 0 : index
    %0 = vector.load %arg1[%c0, %c0_0] : memref<8x256xf32, #tpu.memory_space<vmem>>, vector<8x256xf32>
    %c0_1 = arith.constant 0 : index
    %c0_2 = arith.constant 0 : index
    %1 = vector.load %arg3[%c0_1, %c0_2] : memref<4x8xf32, #tpu.memory_space<vmem>>, vector<4x8xf32>
    %cst = arith.constant dense<0.000000e+00> : vector<4x256xf32>
    %2 = tpu.matmul %1, %0, %cst {dimension_numbers = #tpu.dot_dimension_numbers<[1], [0], [0], [1], [0, 0, 1, 1], [], []>} : vector<4x8xf32>, vector<8x256xf32>, vector<4x256xf32> -> vector<4x256xf32>
    %c0_3 = arith.constant 0 : index
    %c0_4 = arith.constant 0 : index
    %3 = vector.load %arg6[%c0_3, %c0_4] : memref<4x1xf32, #tpu.memory_space<vmem>>, vector<4x1xf32>
    %4 = vector.broadcast %3 : vector<4x1xf32> to vector<4x256xf32>
    %5 = arith.mulf %2, %4 : vector<4x256xf32>
    %c0_5 = arith.constant 0 : index
    %c0_6 = arith.constant 0 : index
    %6 = vector.load %arg4[%c0_5, %c0_6] : memref<8x4xf32, #tpu.memory_space<vmem>>, vector<8x4xf32>
    %cst_7 = arith.constant dense<0.000000e+00> : vector<8x256xf32>
    %7 = tpu.matmul %6, %5, %cst_7 {dimension_numbers = #tpu.dot_dimension_numbers<[1], [0], [0], [1], [0, 0, 1, 1], [], []>} : vector<8x4xf32>, vector<4x256xf32>, vector<8x256xf32> -> vector<8x256xf32>
    %8 = arith.subf %0, %7 : vector<8x256xf32>
    %9 = arith.mulf %8, %8 : vector<8x256xf32>
    %cst_8 = arith.constant dense<0.000000e+00> : vector<4x256xf32>
    %10 = tpu.matmul %1, %9, %cst_8 {dimension_numbers = #tpu.dot_dimension_numbers<[1], [0], [0], [1], [0, 0, 1, 1], [], []>} : vector<4x8xf32>, vector<8x256xf32>, vector<4x256xf32> -> vector<4x256xf32>
    %c0_9 = arith.constant 0 : index
    %c0_10 = arith.constant 0 : index
    %11 = vector.load %arg7[%c0_9, %c0_10] : memref<4x1xf32, #tpu.memory_space<vmem>>, vector<4x1xf32>
    %12 = vector.broadcast %11 : vector<4x1xf32> to vector<4x256xf32>
    %13 = arith.mulf %10, %12 : vector<4x256xf32>
    %cst_11 = arith.constant 0.000000e+00 : f32
    %14 = vector.broadcast %cst_11 : f32 to vector<4x256xf32>
    %15 = arith.maximumf %13, %14 : vector<4x256xf32>
    %16 = math.sqrt %15 : vector<4x256xf32>
    %c0_12 = arith.constant 0 : index
    %c0_13 = arith.constant 0 : index
    %17 = vector.load %arg2[%c0_12, %c0_13] : memref<4x256xf32, #tpu.memory_space<vmem>>, vector<4x256xf32>
    %18 = arith.mulf %16, %17 : vector<4x256xf32>
    %19 = arith.addf %5, %18 : vector<4x256xf32>
    %c0_14 = arith.constant 0 : index
    %c0_15 = arith.constant 0 : index
    %20 = vector.load %arg5[%c0_14, %c0_15] : memref<8x4xf32, #tpu.memory_space<vmem>>, vector<8x4xf32>
    %cst_16 = arith.constant dense<0.000000e+00> : vector<8x256xf32>
    %21 = tpu.matmul %20, %19, %cst_16 {dimension_numbers = #tpu.dot_dimension_numbers<[1], [0], [0], [1], [0, 0, 1, 1], [], []>} : vector<8x4xf32>, vector<4x256xf32>, vector<8x256xf32> -> vector<8x256xf32>
    %cst_17 = arith.constant 0.699999988 : f32
    %22 = vector.broadcast %cst_17 : f32 to vector<8x256xf32>
    %23 = arith.mulf %22, %0 : vector<8x256xf32>
    %cst_18 = arith.constant 3.000000e-01 : f32
    %24 = vector.broadcast %cst_18 : f32 to vector<8x256xf32>
    %25 = arith.mulf %24, %21 : vector<8x256xf32>
    %26 = arith.addf %23, %25 : vector<8x256xf32>
    %c0_19 = arith.constant 0 : index
    %c0_20 = arith.constant 0 : index
    %27 = vector.load %arg8[%c0_19, %c0_20] : memref<8x256xf32, #tpu.memory_space<vmem>>, vector<8x256xf32>
    tpu.vector_store %arg8[%c0_19, %c0_20], %26 {strides = array<i32>} : memref<8x256xf32, #tpu.memory_space<vmem>>, vector<8x256xf32>,
    return
  }
  func.func @transform_0(%arg0: i32) -> (i32, i32) {
    %c0_i32 = arith.constant 0 : i32
    %c0_i32_0 = arith.constant 0 : i32
    return %c0_i32, %arg0 : i32, i32
  }
  func.func @transform_1(%arg0: i32) -> (i32, i32) {
    %c0_i32 = arith.constant 0 : i32
    %c0_i32_0 = arith.constant 0 : i32
    return %c0_i32, %arg0 : i32, i32
  }
  func.func @transform_2(%arg0: i32) -> (i32, i32) {
    %c0_i32 = arith.constant 0 : i32
    %c0_i32_0 = arith.constant 0 : i32
    %c0_i32_1 = arith.constant 0 : i32
    return %c0_i32, %c0_i32_0 : i32, i32
  }
  func.func @transform_3(%arg0: i32) -> (i32, i32) {
    %c0_i32 = arith.constant 0 : i32
    %c0_i32_0 = arith.constant 0 : i32
    %c0_i32_1 = arith.constant 0 : i32
    return %c0_i32, %c0_i32_0 : i32, i32
  }
  func.func @transform_4(%arg0: i32) -> (i32, i32) {
    %c0_i32 = arith.constant 0 : i32
    %c0_i32_0 = arith.constant 0 : i32
    %c0_i32_1 = arith.constant 0 : i32
    return %c0_i32, %c0_i32_0 : i32, i32
  }
  func.func @transform_5(%arg0: i32) -> (i32, i32) {
    %c0_i32 = arith.constant 0 : i32
    %c0_i32_0 = arith.constant 0 : i32
    %c0_i32_1 = arith.constant 0 : i32
    return %c0_i32, %c0_i32_0 : i32, i32
  }
  func.func @transform_6(%arg0: i32) -> (i32, i32) {
    %c0_i32 = arith.constant 0 : i32
    %c0_i32_0 = arith.constant 0 : i32
    %c0_i32_1 = arith.constant 0 : i32
    return %c0_i32, %c0_i32_0 : i32, i32
  }
  func.func @transform_7(%arg0: i32) -> (i32, i32) {
    %c0_i32 = arith.constant 0 : i32
    %c0_i32_0 = arith.constant 0 : i32
    return %c0_i32, %arg0 : i32, i32
  }
}

</mosaic_0001>

<llo_original>
// kernel: tpu_custom_call.1
$region0: #{tpu_custom_call.1}
  #allocation0 [shape = 'u32[]', space=smem, size = 0x4, offset = 0x4, fixed_abs, tag = 'smem constant byte address 0x4 - core index']
  #allocation1 [shape = 'u32[144,128]{1,0:T(1,128)}', space=vmem, size = 0x12000, scoped, tag = 'internal scratch']
  %s0 = inlined_call_operand.hbm [shape: f32[8,1024], index: 0, kind: input, shape index: {}]
  %s1 = inlined_call_operand.vmem [shape: f32[4,1024], index: 1, kind: input, shape index: {}]
  %s2 = inlined_call_operand.hbm [shape: f32[4,8], index: 2, kind: input, shape index: {}]
  %s3 = inlined_call_operand.vmem [shape: f32[8,4], index: 3, kind: input, shape index: {}]
  %s4 = inlined_call_operand.vmem [shape: f32[8,4], index: 4, kind: input, shape index: {}]
  %s5 = inlined_call_operand.vmem [shape: f32[4,1], index: 5, kind: input, shape index: {}]
  %s6 = inlined_call_operand.vmem [shape: f32[4,1], index: 6, kind: input, shape index: {}]
  %s7 = inlined_call_operand.hbm [shape: f32[8,1024], index: 7, kind: output, shape index: {}]
  %s8 = sld [smem:[#allocation0]]
  $region69: #{tpu_custom_call.1} parent=0
    _
  %s10 = ssub.s32 1, %s8
  %s11 = scalar_select 0, %s10, %s8
  $region1: #{tpu_custom_call.1} parent=0
    #allocation2 [shape = 'u8[16384]{0}', space=vmem, size = 0x4000, scoped, tag = 'input window, operand 0']
    #allocation3 [shape = 's32[2]{0}', space=sflag, size = 0x8, scoped, tag = 'scoped memory for tpu_custom_call.1']
    #allocation4 [shape = 's32[2]{0}', space=sflag, size = 0x8, scoped, tag = 'scoped memory for tpu_custom_call.1']
    #allocation5 [shape = 'u8[2048]{0}', space=vmem, size = 0x800, scoped, tag = 'input window, operand 2, single buffered']
    #allocation6 [shape = 's32[1]{0}', space=sflag, size = 0x4, scoped, tag = 'scoped memory for tpu_custom_call.1']
    #allocation7 [shape = 'u8[16384]{0}', space=vmem, size = 0x4000, scoped, tag = 'output window, operand 0']
    %12 = vsyncpa [#allocation3], 0
    %s13 = scalar_lea.sflag [#allocation3], 1
    %14 = vsyncpa %s13, 0
    %15 = vsyncpa [#allocation6], 0
    %16 = vsyncpa [#allocation4], 0
    %s17 = scalar_lea.sflag [#allocation4], 1
    %18 = vsyncpa %s17, 0
    loop: start=0, step=1, limit=6
    $region2: #{tpu_custom_call.1} parent=1 // loop_pre_header
      _
    $region3: #{tpu_custom_call.1} parent=1 // loop_header
      %s20 = sphi 0, %s24
      %p21 = scmp.ge.s32.totalorder %s20, 6
      %s30 = sphi 0, %s32
      %s33 = sphi 0, %s30
      %s34 = sphi 0, %s33
      %s50 = sphi 0, %s34
      %s56 = sphi 0, %s58
      %s59 = sphi 0, %s56
      %s60 = sphi 0, %s59
      %s76 = sphi 0, %s60
      %s80 = sphi 0, %s80
      %s82 = sphi 0, %s80
      %s83 = sphi 0, %s82
      %s97 = sphi 0, %s83
      %s101 = sphi 0, %s101
      %s103 = sphi 0, %s101
      %s104 = sphi 0, %s103
      %s118 = sphi 0, %s104
      %s122 = sphi 0, %s122
      %s124 = sphi 0, %s122
      %s125 = sphi 0, %s124
      %s139 = sphi 0, %s125
      %s143 = sphi 0, %s143
      %s145 = sphi 0, %s143
      %s146 = sphi 0, %s145
      %s160 = sphi 0, %s146
      %s164 = sphi 0, %s164
      %s166 = sphi 0, %s164
      %s167 = sphi 0, %s166
      %s181 = sphi 0, %s167
      %s187 = sphi 0, %s189
      %s190 = sphi 0, %s187
      %s191 = sphi 0, %s190
      %s207 = sphi 0, %s191
    $region4: #{tpu_custom_call.1} parent=1 // loop_header_branch
      %23 = sbr.rel (%p21) target = $region8
    $region5: #{tpu_custom_call.1} parent=1 // loop_body
      %s25 = ssub.s32 %s20, 1
      %s26 = ssub.s32 %s20, 2
      %s27 = sadd.s32 %s20, 1
      %s28 = ssub.s32 %s20, %s27
      %p29 = scmp.eq.s32.totalorder %s28, 0
      %s31 = sadd.s32 %s30, 1
      %s32 = scalar_select %p29, %s30, %s31
      %p35 = pneg %p29
      %p36 = scmp.eq.s32.totalorder %s20, 3
      %p37 = por %p35, %p36
      %p38 = scmp.ne.s32.totalorder %s30, %s33
      %p39 = scmp.eq.s32.totalorder %s20, 0
      %p40 = por %p38, %p39
      %p41 = scmp.ne.s32.totalorder %s30, %s33
      %p42 = scmp.eq.s32.totalorder %s25, 3
      %p43 = por %p41, %p42
      %p44 = scmp.ne.s32.totalorder %s33, %s34
      %p45 = scmp.eq.s32.totalorder %s25, 0
      %p46 = por %p44, %p45
      %p47 = scmp.ne.s32.totalorder %s33, %s34
      %p48 = scmp.eq.s32.totalorder %s26, 3
      %p49 = por %p47, %p48
      %p51 = scmp.ne.s32.totalorder %s34, %s50
      %p52 = scmp.eq.s32.totalorder %s26, 0
      %p53 = por %p51, %p52
      %s54 = ssub.s32 %s20, %s27
      %p55 = scmp.eq.s32.totalorder %s54, 0
      %s57 = sadd.s32 %s56, 1
      %s58 = scalar_select %p55, %s56, %s57
      %p61 = pneg %p55
      %p62 = scmp.eq.s32.totalorder %s20, 3
      %p63 = por %p61, %p62
      %p64 = scmp.ne.s32.totalorder %s56, %s59
      %p65 = scmp.eq.s32.totalorder %s20, 0
      %p66 = por %p64, %p65
      %p67 = scmp.ne.s32.totalorder %s56, %s59
      %p68 = scmp.eq.s32.totalorder %s25, 3
      %p69 = por %p67, %p68
      %p70 = scmp.ne.s32.totalorder %s59, %s60
      %p71 = scmp.eq.s32.totalorder %s25, 0
      %p72 = por %p70, %p71
      %p73 = scmp.ne.s32.totalorder %s59, %s60
      %p74 = scmp.eq.s32.totalorder %s26, 3
      %p75 = por %p73, %p74
      %p77 = scmp.ne.s32.totalorder %s60, %s76
      %p78 = scmp.eq.s32.totalorder %s26, 0
      %p79 = por %p77, %p78
      %s81 = sadd.s32 %s80, 1
      %p84 = scmp.eq.s32.totalorder %s20, 3
      %p85 = scmp.ne.s32.totalorder %s80, %s82
      %p86 = scmp.eq.s32.totalorder %s20, 0
      %p87 = por %p85, %p86
      %p88 = scmp.ne.s32.totalorder %s80, %s82
      %p89 = scmp.eq.s32.totalorder %s25, 3
      %p90 = por %p88, %p89
      %p91 = scmp.ne.s32.totalorder %s82, %s83
      %p92 = scmp.eq.s32.totalorder %s25, 0
      %p93 = por %p91, %p92
      %p94 = scmp.ne.s32.totalorder %s82, %s83
      %p95 = scmp.eq.s32.totalorder %s26, 3
      %p96 = por %p94, %p95
      %p98 = scmp.ne.s32.totalorder %s83, %s97
      %p99 = scmp.eq.s32.totalorder %s26, 0
      %p100 = por %p98, %p99
      %s102 = sadd.s32 %s101, 1
      %p105 = scmp.eq.s32.totalorder %s20, 3
      %p106 = scmp.ne.s32.totalorder %s101, %s103
      %p107 = scmp.eq.s32.totalorder %s20, 0
      %p108 = por %p106, %p107
      %p109 = scmp.ne.s32.totalorder %s101, %s103
      %p110 = scmp.eq.s32.totalorder %s25, 3
      %p111 = por %p109, %p110
      %p112 = scmp.ne.s32.totalorder %s103, %s104
      %p113 = scmp.eq.s32.totalorder %s25, 0
      %p114 = por %p112, %p113
      %p115 = scmp.ne.s32.totalorder %s103, %s104
      %p116 = scmp.eq.s32.totalorder %s26, 3
      %p117 = por %p115, %p116
      %p119 = scmp.ne.s32.totalorder %s104, %s118
      %p120 = scmp.eq.s32.totalorder %s26, 0
      %p121 = por %p119, %p120
      %s123 = sadd.s32 %s122, 1
      %p126 = scmp.eq.s32.totalorder %s20, 3
      %p127 = scmp.ne.s32.totalorder %s122, %s124
      %p128 = scmp.eq.s32.totalorder %s20, 0
      %p129 = por %p127, %p128
      %p130 = scmp.ne.s32.totalorder %s122, %s124
      %p131 = scmp.eq.s32.totalorder %s25, 3
      %p132 = por %p130, %p131
      %p133 = scmp.ne.s32.totalorder %s124, %s125
      %p134 = scmp.eq.s32.totalorder %s25, 0
      %p135 = por %p133, %p134
      %p136 = scmp.ne.s32.totalorder %s124, %s125
      %p137 = scmp.eq.s32.totalorder %s26, 3
      %p138 = por %p136, %p137
      %p140 = scmp.ne.s32.totalorder %s125, %s139
      %p141 = scmp.eq.s32.totalorder %s26, 0
      %p142 = por %p140, %p141
      %s144 = sadd.s32 %s143, 1
      %p147 = scmp.eq.s32.totalorder %s20, 3
      %p148 = scmp.ne.s32.totalorder %s143, %s145
      %p149 = scmp.eq.s32.totalorder %s20, 0
      %p150 = por %p148, %p149
      %p151 = scmp.ne.s32.totalorder %s143, %s145
      %p152 = scmp.eq.s32.totalorder %s25, 3
      %p153 = por %p151, %p152
      %p154 = scmp.ne.s32.totalorder %s145, %s146
      %p155 = scmp.eq.s32.totalorder %s25, 0
      %p156 = por %p154, %p155
      %p157 = scmp.ne.s32.totalorder %s145, %s146
      %p158 = scmp.eq.s32.totalorder %s26, 3
      %p159 = por %p157, %p158
      %p161 = scmp.ne.s32.totalorder %s146, %s160
      %p162 = scmp.eq.s32.totalorder %s26, 0
      %p163 = por %p161, %p162
      %s165 = sadd.s32 %s164, 1
      %p168 = scmp.eq.s32.totalorder %s20, 3
      %p169 = scmp.ne.s32.totalorder %s164, %s166
      %p170 = scmp.eq.s32.totalorder %s20, 0
      %p171 = por %p169, %p170
      %p172 = scmp.ne.s32.totalorder %s164, %s166
      %p173 = scmp.eq.s32.totalorder %s25, 3
      %p174 = por %p172, %p173
      %p175 = scmp.ne.s32.totalorder %s166, %s167
      %p176 = scmp.eq.s32.totalorder %s25, 0
      %p177 = por %p175, %p176
      %p178 = scmp.ne.s32.totalorder %s166, %s167
      %p179 = scmp.eq.s32.totalorder %s26, 3
      %p180 = por %p178, %p179
      %p182 = scmp.ne.s32.totalorder %s167, %s181
      %p183 = scmp.eq.s32.totalorder %s26, 0
      %p184 = por %p182, %p183
      %s185 = ssub.s32 %s20, %s27
      %p186 = scmp.eq.s32.totalorder %s185, 0
      %s188 = sadd.s32 %s187, 1
      %s189 = scalar_select %p186, %s187, %s188
      %p192 = pneg %p186
      %p193 = scmp.eq.s32.totalorder %s20, 3
      %p194 = por %p192, %p193
      %p195 = scmp.ne.s32.totalorder %s187, %s190
      %p196 = scmp.eq.s32.totalorder %s20, 0
      %p197 = por %p195, %p196
      %p198 = scmp.ne.s32.totalorder %s187, %s190
      %p199 = scmp.eq.s32.totalorder %s25, 3
      %p200 = por %p198, %p199
      %p201 = scmp.ne.s32.totalorder %s190, %s191
      %p202 = scmp.eq.s32.totalorder %s25, 0
      %p203 = por %p201, %p202
      %p204 = scmp.ne.s32.totalorder %s190, %s191
      %p205 = scmp.eq.s32.totalorder %s26, 3
      %p206 = por %p204, %p205
      %p208 = scmp.ne.s32.totalorder %s191, %s207
      %p209 = scmp.eq.s32.totalorder %s26, 0
      %p210 = por %p208, %p209
      %p211 = scmp.le.s32.totalorder 1, %s20
      %p212 = scmp.lt.s32.totalorder %s20, 5
      %p213 = pnand %p211, %p212
      %p214 = pneg %p213
      // Predicated region
      $region9: #{tpu_custom_call.1} parent=5 // pred_check
        _
      $region10: #{tpu_custom_call.1} parent=5 // pred_check_branch
        %216 = sbr.rel (%p213) target = $region12
      $region11: #{tpu_custom_call.1} parent=5 // pred_region
        %s217 = ssub.s32 %s20, 1
        // Predicated region
        $region13: #{tpu_custom_call.1} parent=11 // pred_check
          %p218 = pneg %p93
        $region14: #{tpu_custom_call.1} parent=11 // pred_check_branch
          %220 = sbr.rel (%p218) target = $region16
        $region15: #{tpu_custom_call.1} parent=11 // pred_region
          %s222 = ssub.s32 64, 64
          %223 = vsyncadd [#allocation6], %s222
          %s225 = sshll.u32 [#allocation5], 4
          %s226 = int_to_ptr.vmem [resolvable:$true] %s225
          %228 = dma.hbm_to_vmem [thread:$0]  %s2, 64, %s226, [#allocation6]
        $region16: #{tpu_custom_call.1} parent=11 // pred_fallthru
          _
        // Predicated region
        $region17: #{tpu_custom_call.1} parent=11 // pred_check
          %p229 = pneg %p114
        $region18: #{tpu_custom_call.1} parent=11 // pred_check_branch
          %231 = sbr.rel (%p229) target = $region20
        $region19: #{tpu_custom_call.1} parent=11 // pred_region
          _
        $region20: #{tpu_custom_call.1} parent=11 // pred_fallthru
          _
        // Predicated region
        $region21: #{tpu_custom_call.1} parent=11 // pred_check
          %p232 = pneg %p135
        $region22: #{tpu_custom_call.1} parent=11 // pred_check_branch
          %234 = sbr.rel (%p232) target = $region24
        $region23: #{tpu_custom_call.1} parent=11 // pred_region
          _
        $region24: #{tpu_custom_call.1} parent=11 // pred_fallthru
          _
        // Predicated region
        $region25: #{tpu_custom_call.1} parent=11 // pred_check
          %p235 = pneg %p156
        $region26: #{tpu_custom_call.1} parent=11 // pred_check_branch
          %237 = sbr.rel (%p235) target = $region28
        $region27: #{tpu_custom_call.1} parent=11 // pred_region
          _
        $region28: #{tpu_custom_call.1} parent=11 // pred_fallthru
          _
        // Predicated region
        $region29: #{tpu_custom_call.1} parent=11 // pred_check
          %p238 = pneg %p177
        $region30: #{tpu_custom_call.1} parent=11 // pred_check_branch
          %240 = sbr.rel (%p238) target = $region32
        $region31: #{tpu_custom_call.1} parent=11 // pred_region
          _
        $region32: #{tpu_custom_call.1} parent=11 // pred_fallthru
          _
      $region12: #{tpu_custom_call.1} parent=5 // pred_fallthru
        _
      %p241 = scmp.lt.s32.totalorder %s20, 4
      // Predicated region
      $region33: #{tpu_custom_call.1} parent=5 // pred_check
        %p242 = pneg %p241
      $region34: #{tpu_custom_call.1} parent=5 // pred_check_branch
        %244 = sbr.rel (%p242) target = $region36
      $region35: #{tpu_custom_call.1} parent=5 // pred_region
        // Predicated region
        $region37: #{tpu_custom_call.1} parent=35 // pred_check
          %p245 = pneg %p40
        $region38: #{tpu_custom_call.1} parent=35 // pred_check_branch
          %247 = sbr.rel (%p245) target = $region40
        $region39: #{tpu_custom_call.1} parent=35 // pred_region
          %s248 = sand.u32 %s30, 1
          %s249 = scalar_lea.sflag [#allocation3], %s248
          %s250 = sand.u32 %s30, 1
          %s251 = smul.addr %s250, 16
          %s252 = scalar_lea.vmem [#allocation2], %s251
          %s253 = smul.u32 2, %s20
          %s255 = ssub.s32 256, 256
          %256 = vsyncadd %s249, %s255
          %s257 = smul.addr %s253, 128
          %s258 = scalar_lea.hbm %s0, %s257
          %s260 = sshll.u32 %s252, 4
          %s261 = int_to_ptr.vmem [resolvable:$true] %s260
          %263 = dma.hbm_to_vmem [thread:$0]  %s258, 256, %s261, %s249
        $region40: #{tpu_custom_call.1} parent=35 // pred_fallthru
          _
        // Predicated region
        $region41: #{tpu_custom_call.1} parent=35 // pred_check
          %p264 = pneg %p66
        $region42: #{tpu_custom_call.1} parent=35 // pred_check_branch
          %266 = sbr.rel (%p264) target = $region44
        $region43: #{tpu_custom_call.1} parent=35 // pred_region
          %s267 = smul.u32 2, %s20
          %p268 = scmp.lt.s32.totalorder %s267, 7
          %s269 = scalar_select %p268, %s267, 7
          %s270 = smul.addr %s269, 4
          %s271 = scalar_lea.vmem %s1, %s270
          %s272 = smul.u32 2, %s20
        $region44: #{tpu_custom_call.1} parent=35 // pred_fallthru
          _
      $region36: #{tpu_custom_call.1} parent=5 // pred_fallthru
        _
      %p273 = scmp.le.s32.totalorder 1, %s20
      %p274 = scmp.lt.s32.totalorder %s20, 5
      %p275 = pnand %p273, %p274
      %p276 = pneg %p275
      // Predicated region
      $region45: #{tpu_custom_call.1} parent=5 // pred_check
        _
      $region46: #{tpu_custom_call.1} parent=5 // pred_check_branch
        %278 = sbr.rel (%p275) target = $region48
      $region47: #{tpu_custom_call.1} parent=5 // pred_region
        %s279 = ssub.s32 %s20, 1
        %s280 = sand.u32 %s33, 1
        %s281 = scalar_lea.sflag [#allocation3], %s280
        %s282 = sand.u32 %s33, 1
        %s283 = smul.addr %s282, 16
        %s284 = scalar_lea.vmem [#allocation2], %s283
        // Predicated region
        $region49: #{tpu_custom_call.1} parent=47 // pred_check
          %p285 = pneg %p46
        $region50: #{tpu_custom_call.1} parent=47 // pred_check_branch
          %287 = sbr.rel (%p285) target = $region52
        $region51: #{tpu_custom_call.1} parent=47 // pred_region
          %288 = dma.done %s281, 256
        $region52: #{tpu_custom_call.1} parent=47 // pred_fallthru
          _
        // Predicated region
        $region53: #{tpu_custom_call.1} parent=47 // pred_check
          %p289 = pneg %p93
        $region54: #{tpu_custom_call.1} parent=47 // pred_check_branch
          %291 = sbr.rel (%p289) target = $region56
        $region55: #{tpu_custom_call.1} parent=47 // pred_region
          %292 = dma.done [#allocation6], 64
        $region56: #{tpu_custom_call.1} parent=47 // pred_fallthru
          _
        %s293 = sand.u32 %s33, 1
        %s294 = scalar_lea.sflag [#allocation3], %s293
        %s295 = sand.u32 %s33, 1
        %s296 = smul.addr %s295, 16
        %s297 = scalar_lea.vmem [#allocation2], %s296
        %p298 = pneg %p46
        %p299 = pneg %p43
        %s300 = smul.u32 2, %s25
        %p301 = scmp.lt.s32.totalorder %s300, 7
        %s302 = scalar_select %p301, %s300, 7
        %s303 = smul.addr %s302, 4
        %s304 = scalar_lea.vmem %s1, %s303
        %p305 = pneg %p72
        %p306 = pneg %p69
        %p307 = pneg %p93
        %p308 = pneg %p90
        %p309 = pneg %p114
        %p310 = pneg %p111
        %p311 = pneg %p135
        %p312 = pneg %p132
        %p313 = pneg %p156
        %p314 = pneg %p153
        %p315 = pneg %p177
        %p316 = pneg %p174
        %p317 = pneg %p203
        %p318 = pneg %p200
        %s319 = sand.u32 %s190, 1
        %s320 = scalar_lea.sflag [#allocation4], %s319
        %s321 = sand.u32 %s190, 1
        %s322 = smul.addr %s321, 16
        %s323 = scalar_lea.vmem [#allocation7], %s322
        %s324 = smul.u32 2, %s25
        %s325 = smul.u32 2, %s25
        %p326 = scmp.lt.s32.totalorder %s325, 7
        %s327 = scalar_select %p326, %s325, 7
        %s328 = smul.addr %s327, 4
        %s329 = scalar_lea.vmem %s1, %s328
        %s330 = smul.u32 2, %s25
        %s331 = smul.u32 2, %s25
        %v332 = vld [vmem:[%s284] sm:$0xff]
        %v333 = vld [vmem:[%s284 + $0x8] sm:$0xff]
        %v334 = vld [vmem:[#allocation5] sm:$0xf]
        %vm335 = vcmask 64512
        %v337 = vsel %vm335, %v334, 0
        %339 = vmatprep.subr.mxu0 0.0
        %340 = vmatpush1.msra.mxu0 0.0
        %341 = vmatprep.subr.mxu0 0.0
        %342 = vmatpush1.msra.mxu0 0.0
        %343 = vmatprep.subr.mxu0 0.0
        %344 = vmatpush1.msra.mxu0 0.0
        %345 = vmatprep.subr.mxu0 0.0
        %346 = vmatpush1.msra.mxu0 0.0
        %347 = vmatprep.subr.mxu0 0.0
        %348 = vmatpush1.msra.mxu0 0.0
        %349 = vmatprep.subr.mxu0 0.0
        %350 = vmatpush1.msra.mxu0 0.0
        %351 = vmatprep.subr.mxu0 0.0
        %352 = vmatpush1.msra.mxu0 0.0
        %353 = vmatprep.subr.mxu0 0.0
        %354 = vmatpush1.msra.mxu0 0.0
        %355 = vmatprep.subr.mxu0 0.0
        %356 = vmatpush1.msra.mxu0 0.0
        %357 = vmatprep.subr.mxu0 0.0
        %358 = vmatpush1.msra.mxu0 0.0
        %359 = vmatprep.subr.mxu0 0.0
        %360 = vmatpush1.msra.mxu0 0.0
        %361 = vmatprep.subr.mxu0 0.0
        %362 = vmatpush1.msra.mxu0 0.0
        %363 = vmatprep.subr.mxu0 0.0
        %364 = vmatpush1.msra.mxu0 0.0
        %365 = vmatprep.subr.mxu0 0.0
        %366 = vmatpush1.msra.mxu0 0.0
        %367 = vmatprep.subr.mxu0 0.0
        %368 = vmatpush1.msra.mxu0 0.0
        %369 = vmatprep.subr.mxu0 %v333
        %370 = vmatpush1.msra.mxu0 %v332
        %371 = vmatprep.subr.mxu0 0.0
        %372 = vmatpush2.msra.mxu0 0.0
        %373 = vmatprep.subr.mxu0 0.0
        %374 = vmatpush2.msra.mxu0 0.0
        %375 = vmatprep.subr.mxu0 0.0
        %376 = vmatpush2.msra.mxu0 0.0
        %377 = vmatprep.subr.mxu0 0.0
        %378 = vmatpush2.msra.mxu0 0.0
        %379 = vmatprep.subr.mxu0 0.0
        %380 = vmatpush2.msra.mxu0 0.0
        %381 = vmatprep.subr.mxu0 0.0
        %382 = vmatpush2.msra.mxu0 0.0
        %383 = vmatprep.subr.mxu0 0.0
        %384 = vmatpush2.msra.mxu0 0.0
        %385 = vmatprep.subr.mxu0 0.0
        %386 = vmatpush2.msra.mxu0 0.0
        %387 = vmatprep.subr.mxu0 0.0
        %388 = vmatpush2.msra.mxu0 0.0
        %389 = vmatprep.subr.mxu0 0.0
        %390 = vmatpush2.msra.mxu0 0.0
        %391 = vmatprep.subr.mxu0 0.0
        %392 = vmatpush2.msra.mxu0 0.0
        %393 = vmatprep.subr.mxu0 0.0
        %394 = vmatpush2.msra.mxu0 0.0
        %395 = vmatprep.subr.mxu0 0.0
        %396 = vmatpush2.msra.mxu0 0.0
        %397 = vmatprep.subr.mxu0 0.0
        %398 = vmatpush2.msra.mxu0 0.0
        %399 = vmatprep.subr.mxu0 0.0
        %400 = vmatpush2.msra.mxu0 0.0
        %401 = vmatprep.subr.mxu0 0.0
        %402 = vmatpush2.msra.mxu0 0.0
        %403 = vmatprep.mubr.f32.mxu0 0.0
        %404 = vmatmul.mubr.f32.gmra.mxu0 %v337
        %v405 = vpop.f32.mrf.mxu0
        %v406 = vadd.f32 0.0, %v405
        %v407 = vpop.f32.mrf.mxu0
        %v408 = vadd.f32 0.0, %v407
        %409 = vdwg.mxu0
        %v410 = vld [vmem:[%s5] sm:$0xf]
        %412 = vset.pattern.permute.xlu0 0
        %413 = vperm.xlu0 %412, %v410
        %v414 = vpop.permute.xlu0 %413
        %v416 = vmul.f32 %v406, %v414
        %v417 = vmul.f32 %v408, %v414
        %v418 = vld [vmem:[%s3] sm:$0xff]
        %vm419 = vcmask 31744
        %v421 = vsel %vm419, %v418, 0
        %vm423 = vcmask 1043456
        %v425 = vsel %vm423, %v416, 0
        %v428 = vsel %vm423, %v417, 0
        %430 = vmatprep.subr.mxu0 0.0
        %431 = vmatpush1.msra.mxu0 0.0
        %432 = vmatprep.subr.mxu0 0.0
        %433 = vmatpush1.msra.mxu0 0.0
        %434 = vmatprep.subr.mxu0 0.0
        %435 = vmatpush1.msra.mxu0 0.0
        %436 = vmatprep.subr.mxu0 0.0
        %437 = vmatpush1.msra.mxu0 0.0
        %438 = vmatprep.subr.mxu0 0.0
        %439 = vmatpush1.msra.mxu0 0.0
        %440 = vmatprep.subr.mxu0 0.0
        %441 = vmatpush1.msra.mxu0 0.0
        %442 = vmatprep.subr.mxu0 0.0
        %443 = vmatpush1.msra.mxu0 0.0
        %444 = vmatprep.subr.mxu0 0.0
        %445 = vmatpush1.msra.mxu0 0.0
        %446 = vmatprep.subr.mxu0 0.0
        %447 = vmatpush1.msra.mxu0 0.0
        %448 = vmatprep.subr.mxu0 0.0
        %449 = vmatpush1.msra.mxu0 0.0
        %450 = vmatprep.subr.mxu0 0.0
        %451 = vmatpush1.msra.mxu0 0.0
        %452 = vmatprep.subr.mxu0 0.0
        %453 = vmatpush1.msra.mxu0 0.0
        %454 = vmatprep.subr.mxu0 0.0
        %455 = vmatpush1.msra.mxu0 0.0
        %456 = vmatprep.subr.mxu0 0.0
        %457 = vmatpush1.msra.mxu0 0.0
        %458 = vmatprep.subr.mxu0 0.0
        %459 = vmatpush1.msra.mxu0 0.0
        %460 = vmatprep.subr.mxu0 %v428
        %461 = vmatpush1.msra.mxu0 %v425
        %462 = vmatprep.subr.mxu0 0.0
        %463 = vmatpush2.msra.mxu0 0.0
        %464 = vmatprep.subr.mxu0 0.0
        %465 = vmatpush2.msra.mxu0 0.0
        %466 = vmatprep.subr.mxu0 0.0
        %467 = vmatpush2.msra.mxu0 0.0
        %468 = vmatprep.subr.mxu0 0.0
        %469 = vmatpush2.msra.mxu0 0.0
        %470 = vmatprep.subr.mxu0 0.0
        %471 = vmatpush2.msra.mxu0 0.0
        %472 = vmatprep.subr.mxu0 0.0
        %473 = vmatpush2.msra.mxu0 0.0
        %474 = vmatprep.subr.mxu0 0.0
        %475 = vmatpush2.msra.mxu0 0.0
        %476 = vmatprep.subr.mxu0 0.0
        %477 = vmatpush2.msra.mxu0 0.0
        %478 = vmatprep.subr.mxu0 0.0
        %479 = vmatpush2.msra.mxu0 0.0
        %480 = vmatprep.subr.mxu0 0.0
        %481 = vmatpush2.msra.mxu0 0.0
        %482 = vmatprep.subr.mxu0 0.0
        %483 = vmatpush2.msra.mxu0 0.0
        %484 = vmatprep.subr.mxu0 0.0
        %485 = vmatpush2.msra.mxu0 0.0
        %486 = vmatprep.subr.mxu0 0.0
        %487 = vmatpush2.msra.mxu0 0.0
        %488 = vmatprep.subr.mxu0 0.0
        %489 = vmatpush2.msra.mxu0 0.0
        %490 = vmatprep.subr.mxu0 0.0
        %491 = vmatpush2.msra.mxu0 0.0
        %492 = vmatprep.subr.mxu0 0.0
        %493 = vmatpush2.msra.mxu0 0.0
        %494 = vmatprep.mubr.f32.mxu0 0.0
        %495 = vmatmul.mubr.f32.gmra.mxu0 %v421
        %v496 = vpop.f32.mrf.mxu0
        %v497 = vadd.f32 0.0, %v496
        %v498 = vpop.f32.mrf.mxu0
        %v499 = vadd.f32 0.0, %v498
        %500 = vdwg.mxu0
        %v501 = vsub.f32 %v332, %v497
        %v502 = vsub.f32 %v333, %v499
        %v503 = vmul.f32 %v501, %v501
        %v504 = vmul.f32 %v502, %v502
        %505 = vmatprep.subr.mxu0 0.0
        %506 = vmatpush1.msra.mxu0 0.0
        %507 = vmatprep.subr.mxu0 0.0
        %508 = vmatpush1.msra.mxu0 0.0
        %509 = vmatprep.subr.mxu0 0.0
        %510 = vmatpush1.msra.mxu0 0.0
        %511 = vmatprep.subr.mxu0 0.0
        %512 = vmatpush1.msra.mxu0 0.0
        %513 = vmatprep.subr.mxu0 0.0
        %514 = vmatpush1.msra.mxu0 0.0
        %515 = vmatprep.subr.mxu0 0.0
        %516 = vmatpush1.msra.mxu0 0.0
        %517 = vmatprep.subr.mxu0 0.0
        %518 = vmatpush1.msra.mxu0 0.0
        %519 = vmatprep.subr.mxu0 0.0
        %520 = vmatpush1.msra.mxu0 0.0
        %521 = vmatprep.subr.mxu0 0.0
        %522 = vmatpush1.msra.mxu0 0.0
        %523 = vmatprep.subr.mxu0 0.0
        %524 = vmatpush1.msra.mxu0 0.0
        %525 = vmatprep.subr.mxu0 0.0
        %526 = vmatpush1.msra.mxu0 0.0
        %527 = vmatprep.subr.mxu0 0.0
        %528 = vmatpush1.msra.mxu0 0.0
        %529 = vmatprep.subr.mxu0 0.0
        %530 = vmatpush1.msra.mxu0 0.0
        %531 = vmatprep.subr.mxu0 0.0
        %532 = vmatpush1.msra.mxu0 0.0
        %533 = vmatprep.subr.mxu0 0.0
        %534 = vmatpush1.msra.mxu0 0.0
        %535 = vmatprep.subr.mxu0 %v504
        %536 = vmatpush1.msra.mxu0 %v503
        %537 = vmatprep.subr.mxu0 0.0
        %538 = vmatpush2.msra.mxu0 0.0
        %539 = vmatprep.subr.mxu0 0.0
        %540 = vmatpush2.msra.mxu0 0.0
        %541 = vmatprep.subr.mxu0 0.0
        %542 = vmatpush2.msra.mxu0 0.0
        %543 = vmatprep.subr.mxu0 0.0
        %544 = vmatpush2.msra.mxu0 0.0
        %545 = vmatprep.subr.mxu0 0.0
        %546 = vmatpush2.msra.mxu0 0.0
        %547 = vmatprep.subr.mxu0 0.0
        %548 = vmatpush2.msra.mxu0 0.0
        %549 = vmatprep.subr.mxu0 0.0
        %550 = vmatpush2.msra.mxu0 0.0
        %551 = vmatprep.subr.mxu0 0.0
        %552 = vmatpush2.msra.mxu0 0.0
        %553 = vmatprep.subr.mxu0 0.0
        %554 = vmatpush2.msra.mxu0 0.0
        %555 = vmatprep.subr.mxu0 0.0
        %556 = vmatpush2.msra.mxu0 0.0
        %557 = vmatprep.subr.mxu0 0.0
        %558 = vmatpush2.msra.mxu0 0.0
        %559 = vmatprep.subr.mxu0 0.0
        %560 = vmatpush2.msra.mxu0 0.0
        %561 = vmatprep.subr.mxu0 0.0
        %562 = vmatpush2.msra.mxu0 0.0
        %563 = vmatprep.subr.mxu0 0.0
        %564 = vmatpush2.msra.mxu0 0.0
        %565 = vmatprep.subr.mxu0 0.0
        %566 = vmatpush2.msra.mxu0 0.0
        %567 = vmatprep.subr.mxu0 0.0
        %568 = vmatpush2.msra.mxu0 0.0
        %569 = vmatprep.mubr.f32.mxu0 0.0
        %570 = vmatmul.mubr.f32.gmra.mxu0 %v337
        %v571 = vpop.f32.mrf.mxu0
        %v572 = vadd.f32 0.0, %v571
        %v573 = vpop.f32.mrf.mxu0
        %v574 = vadd.f32 0.0, %v573
        %575 = vdwg.mxu0
        %v576 = vld [vmem:[%s6] sm:$0xf]
        %578 = vset.pattern.permute.xlu0 0
        %579 = vperm.xlu0 %578, %v576
        %v580 = vpop.permute.xlu0 %579
        %v582 = vmul.f32 %v572, %v580
        %v583 = vmul.f32 %v574, %v580
        %v584 = vmax.f32 %v582, 0.0
        %v585 = vmax.f32 %v583, 0.0
        %v586 = vrsqrt.pop %v584
        %v587 = vmul.f32 %v584, %v586
        %vm588 = vcmp.eq.f32.partialorder %v584, inf
        %v589 = vsel %vm588, %v584, %v587
        %vm590 = vcmp.eq.f32.partialorder %v584, 0.0
        %v591 = vand.u32 %v584, 2147483648
        %v592 = vsel %vm590, %v591, %v589
        %v593 = vrsqrt.pop %v585
        %v594 = vmul.f32 %v585, %v593
        %vm595 = vcmp.eq.f32.partialorder %v585, inf
        %v596 = vsel %vm595, %v585, %v594
        %vm597 = vcmp.eq.f32.partialorder %v585, 0.0
        %v598 = vand.u32 %v585, 2147483648
        %v599 = vsel %vm597, %v598, %v596
        %v600 = vld [vmem:[%s329] sm:$0xff]
        %v602 = vcombine.high %v600, %v600
        %v604 = vmul.f32 %v592, %v600
        %v605 = vmul.f32 %v599, %v602
        %v606 = vadd.f32 %v416, %v604
        %v607 = vadd.f32 %v417, %v605
        %v608 = vld [vmem:[%s4] sm:$0xff]
        %v610 = vsel %vm419, %v608, 0
        %v613 = vsel %vm423, %v606, 0
        %v616 = vsel %vm423, %v607, 0
        %618 = vmatprep.subr.mxu0 0.0
        %619 = vmatpush1.msra.mxu0 0.0
        %620 = vmatprep.subr.mxu0 0.0
        %621 = vmatpush1.msra.mxu0 0.0
        %622 = vmatprep.subr.mxu0 0.0
        %623 = vmatpush1.msra.mxu0 0.0
        %624 = vmatprep.subr.mxu0 0.0
        %625 = vmatpush1.msra.mxu0 0.0
        %626 = vmatprep.subr.mxu0 0.0
        %627 = vmatpush1.msra.mxu0 0.0
        %628 = vmatprep.subr.mxu0 0.0
        %629 = vmatpush1.msra.mxu0 0.0
        %630 = vmatprep.subr.mxu0 0.0
        %631 = vmatpush1.msra.mxu0 0.0
        %632 = vmatprep.subr.mxu0 0.0
        %633 = vmatpush1.msra.mxu0 0.0
        %634 = vmatprep.subr.mxu0 0.0
        %635 = vmatpush1.msra.mxu0 0.0
        %636 = vmatprep.subr.mxu0 0.0
        %637 = vmatpush1.msra.mxu0 0.0
        %638 = vmatprep.subr.mxu0 0.0
        %639 = vmatpush1.msra.mxu0 0.0
        %640 = vmatprep.subr.mxu0 0.0
        %641 = vmatpush1.msra.mxu0 0.0
        %642 = vmatprep.subr.mxu0 0.0
        %643 = vmatpush1.msra.mxu0 0.0
        %644 = vmatprep.subr.mxu0 0.0
        %645 = vmatpush1.msra.mxu0 0.0
        %646 = vmatprep.subr.mxu0 0.0
        %647 = vmatpush1.msra.mxu0 0.0
        %648 = vmatprep.subr.mxu0 %v616
        %649 = vmatpush1.msra.mxu0 %v613
        %650 = vmatprep.subr.mxu0 0.0
        %651 = vmatpush2.msra.mxu0 0.0
        %652 = vmatprep.subr.mxu0 0.0
        %653 = vmatpush2.msra.mxu0 0.0
        %654 = vmatprep.subr.mxu0 0.0
        %655 = vmatpush2.msra.mxu0 0.0
        %656 = vmatprep.subr.mxu0 0.0
        %657 = vmatpush2.msra.mxu0 0.0
        %658 = vmatprep.subr.mxu0 0.0
        %659 = vmatpush2.msra.mxu0 0.0
        %660 = vmatprep.subr.mxu0 0.0
        %661 = vmatpush2.msra.mxu0 0.0
        %662 = vmatprep.subr.mxu0 0.0
        %663 = vmatpush2.msra.mxu0 0.0
        %664 = vmatprep.subr.mxu0 0.0
        %665 = vmatpush2.msra.mxu0 0.0
        %666 = vmatprep.subr.mxu0 0.0
        %667 = vmatpush2.msra.mxu0 0.0
        %668 = vmatprep.subr.mxu0 0.0
        %669 = vmatpush2.msra.mxu0 0.0
        %670 = vmatprep.subr.mxu0 0.0
        %671 = vmatpush2.msra.mxu0 0.0
        %672 = vmatprep.subr.mxu0 0.0
        %673 = vmatpush2.msra.mxu0 0.0
        %674 = vmatprep.subr.mxu0 0.0
        %675 = vmatpush2.msra.mxu0 0.0
        %676 = vmatprep.subr.mxu0 0.0
        %677 = vmatpush2.msra.mxu0 0.0
        %678 = vmatprep.subr.mxu0 0.0
        %679 = vmatpush2.msra.mxu0 0.0
        %680 = vmatprep.subr.mxu0 0.0
        %681 = vmatpush2.msra.mxu0 0.0
        %682 = vmatprep.mubr.f32.mxu0 0.0
        %683 = vmatmul.mubr.f32.gmra.mxu0 %v610
        %v684 = vpop.f32.mrf.mxu0
        %v685 = vadd.f32 0.0, %v684
        %v686 = vpop.f32.mrf.mxu0
        %v687 = vadd.f32 0.0, %v686
        %688 = vdwg.mxu0
        %v689 = vmul.f32 %v332, 0.7
        %v690 = vmul.f32 %v333, 0.7
        %v691 = vmul.f32 %v685, 0.3
        %v692 = vmul.f32 %v687, 0.3
        %v693 = vadd.f32 %v689, %v691
        %v694 = vadd.f32 %v690, %v692
        %695 = vst [vmem:[%s323] sm:$0xff] %v693
        %696 = vst [vmem:[%s323 + $0x8] sm:$0xff] %v694
        %s697 = sand.u32 %s190, 1
        %s698 = scalar_lea.sflag [#allocation4], %s697
        %s699 = sand.u32 %s190, 1
        %s700 = smul.addr %s699, 16
        %s701 = scalar_lea.vmem [#allocation7], %s700
        // Predicated region
        $region57: #{tpu_custom_call.1} parent=47 // pred_check
          %p702 = pneg %p200
        $region58: #{tpu_custom_call.1} parent=47 // pred_check_branch
          %704 = sbr.rel (%p702) target = $region60
        $region59: #{tpu_custom_call.1} parent=47 // pred_region
          %s705 = smul.u32 2, %s25
          %s707 = ssub.s32 256, 256
          %708 = vsyncadd %s698, %s707
          %s709 = smul.addr %s705, 128
          %s710 = scalar_lea.hbm %s7, %s709
          %s712 = sshll.u32 %s701, 4
          %s713 = int_to_ptr.vmem [resolvable:$true] %s712
          %715 = dma.vmem_to_hbm [thread:$0]  %s713, 256, %s710, %s698
        $region60: #{tpu_custom_call.1} parent=47 // pred_fallthru
          _
      $region48: #{tpu_custom_call.1} parent=5 // pred_fallthru
        _
      %p716 = scmp.le.s32.totalorder 2, %s20
      // Predicated region
      $region61: #{tpu_custom_call.1} parent=5 // pred_check
        %p717 = pneg %p716
      $region62: #{tpu_custom_call.1} parent=5 // pred_check_branch
        %719 = sbr.rel (%p717) target = $region64
      $region63: #{tpu_custom_call.1} parent=5 // pred_region
        %s720 = ssub.s32 %s20, 2
        // Predicated region
        $region65: #{tpu_custom_call.1} parent=63 // pred_check
          %p721 = pneg %p206
        $region66: #{tpu_custom_call.1} parent=63 // pred_check_branch
          %723 = sbr.rel (%p721) target = $region68
        $region67: #{tpu_custom_call.1} parent=63 // pred_region
          %s724 = sand.u32 %s191, 1
          %s725 = scalar_lea.sflag [#allocation4], %s724
          %s726 = sand.u32 %s191, 1
          %s727 = smul.addr %s726, 16
          %s728 = scalar_lea.vmem [#allocation7], %s727
          %729 = dma.done %s725, 256
        $region68: #{tpu_custom_call.1} parent=63 // pred_fallthru
          _
      $region64: #{tpu_custom_call.1} parent=5 // pred_fallthru
        _
    $region6: #{tpu_custom_call.1} parent=1 // loop_footer
      %s24 = sadd.s32 1, %s20
    $region7: #{tpu_custom_call.1} parent=1 // loop_footer_branch
      %19 = sbr.rel target = $region3
    $region8: #{tpu_custom_call.1} parent=1 // loop_exit
      _
    %730 = vsyncpa [#allocation3], 1
    %s731 = scalar_lea.sflag [#allocation3], 1
    %732 = vsyncpa %s731, 1
    %733 = vsyncpa [#allocation6], 1
    %734 = vsyncpa [#allocation4], 1
    %s735 = scalar_lea.sflag [#allocation4], 1
    %736 = vsyncpa %s735, 1

</llo_original>
